<compile_context>
chip_gen: v7x
topology: tpu7x:2x2x1
jax: 0.10.0
libtpu: 0.0.40
codegen_flags: <defaults>
</compile_context>

<pallas_src>
import jax
import jax.numpy as jnp
from jax import lax
from jax.experimental import pallas as pl
from jax.experimental.pallas import tpu as pltpu


def _make_idp_kernel(orders, k):
    """Build a kernel with the (static) polynomial orders baked in."""
    orders = tuple(int(o) for o in orders)
    consecutive = all(b == a + 1 for a, b in zip(orders[:-1], orders[1:]))

    def kernel(d_ref, p_ref, o_ref):
        # Block shapes per grid step:
        #   d_ref : (1,  TN)  f32  -- distances tile (pairs on lanes)
        #   p_ref : (2K, TN)  f32  -- rows [0..K) = site-0 coeffs, [K..2K) = site-1 coeffs
        #   o_ref : (1,  TN)  f32  -- per-pair energies tile
        inv = 1.0 / d_ref[...]                                        # (1, TN)

        if consecutive:
            # Horner: c_0 + inv*(c_1 + inv*(... + inv*c_{K-1})), then * inv**orders[0]
            acc = p_ref[k - 1:k, :] + p_ref[2 * k - 1:2 * k, :]
            for j in range(k - 2, -1, -1):
                cj = p_ref[j:j + 1, :] + p_ref[k + j:k + j + 1, :]
                acc = cj + inv * acc
            if orders[0] != 0:
                acc = acc * lax.integer_pow(inv, orders[0])
        else:
            # Arbitrary (static) integer orders: per-order multiply chains, still VPU-only.
            acc = jnp.zeros_like(inv)
            for j in range(k):
                cj = p_ref[j:j + 1, :] + p_ref[k + j:k + j + 1, :]
                acc = acc + cj * lax.integer_pow(inv, orders[j])

        o_ref[...] = 0.5 * acc                                        # the 0.5 site-mix, folded once

    return kernel


def _pick_tile_n(n, max_tile=8192):
    """Lane-tile size: large (amortize per-step overhead), multiple of 128,
    and split so the grid has >= 2 blocks when possible (v7x has 2 TensorCores)."""
    n128 = pl.cdiv(n, 128) * 128
    if n128 <= 128:
        return 128
    if n128 <= 2 * max_tile:
        return pl.cdiv(n128 // 2, 128) * 128
    return max_tile


def inverse_distance_polynomial(distances, parameters, orders, *, tile_n=None):
    n = distances.shape[0]
    # Orders are a registered buffer -> concrete at trace time; bake them in.
    orders_t = tuple(int(o) for o in jax.device_get(jnp.asarray(orders)))
    k = len(orders_t)
    assert parameters.shape == (2, n, k), "parameters must be (2, N, K)"

    if tile_n is None:
        tile_n = _pick_tile_n(n)
    assert tile_n % 128 == 0, "tile_n must be a multiple of 128"
    n_pad = pl.cdiv(n, tile_n) * tile_n

    # Glue (single fused HBM pass for the parameters): (2, N, K) -> (2, K, N) -> (2K, N_pad).
    # Padded distances = 1.0 and padded coefficients = 0.0 => padded-pair energies are 0.
    d2 = distances.astype(jnp.float32).reshape(1, n)
    p2k = jnp.transpose(parameters.astype(jnp.float32), (0, 2, 1)).reshape(2 * k, n)
    if n_pad != n:
        d2 = jnp.pad(d2, ((0, 0), (0, n_pad - n)), constant_values=1.0)
        p2k = jnp.pad(p2k, ((0, 0), (0, n_pad - n)))

    grid = (n_pad // tile_n,)
    out = pl.pallas_call(
        _make_idp_kernel(orders_t, k),
        out_shape=jax.ShapeDtypeStruct((1, n_pad), jnp.float32),
        grid_spec=pltpu.PrefetchScalarGridSpec(
            num_scalar_prefetch=0,
            grid=grid,
            in_specs=[
                pl.BlockSpec((1, tile_n), lambda i: (0, i)),        # distances tile
                pl.BlockSpec((2 * k, tile_n), lambda i: (0, i)),    # both coeff sets, 2K sublanes
            ],
            out_specs=pl.BlockSpec((1, tile_n), lambda i: (0, i)),
        ),
        compiler_params=pltpu.CompilerParams(
            dimension_semantics=("parallel",)),
    )(d2, p2k)
    return out[0, :n]


def _reference(distances, parameters, orders):
    inv = 1.0 / distances
    powers = inv[:, None] ** orders[None, :].astype(inv.dtype)
    mixed = 0.5 * (parameters[0] + parameters[1])
    return jnp.sum(powers * mixed, axis=1)


if __name__ == "__main__":
    key = jax.random.PRNGKey(0)
    k_dist, k_par = jax.random.split(key)

    # Module construction: InverseDistancePolynomial(orders=4) -> orders buffer [1,2,3,4]
    orders = jnp.arange(1, 5, dtype=jnp.int32)
    K = int(orders.shape[0])
    N = 300  # number of interaction-site pairs (non-multiple of 128 to exercise padding)

    distances = jax.random.uniform(k_dist, (N,), jnp.float32, minval=0.5, maxval=2.5)
    parameters = jax.random.normal(k_par, (2, N, K), dtype=jnp.float32)

    energies = inverse_distance_polynomial(distances, parameters, orders)
    energies = jax.block_until_ready(energies)

    ref = _reference(distances, parameters, orders)
    assert energies.shape == (N,)
    assert energies.dtype == jnp.float32
    # Horner/integer multiply chain differs from the exp(log) float-pow reference at ULP level.
    assert jnp.allclose(energies, ref, rtol=1e-4, atol=1e-4), "mismatch vs reference"

    print("KERNEL_OK")
</pallas_src>

<mosaic_0001>
module attributes {stable_mosaic.version = 11 : i64} {
  func.func @kernel(%arg0: i32, %arg1: memref<1x256xf32, #tpu.memory_space<vmem>>, %arg2: memref<8x256xf32, #tpu.memory_space<vmem>>, %arg3: memref<1x256xf32, #tpu.memory_space<vmem>>) attributes {dimension_semantics = [#tpu.dimension_semantics<parallel>], iteration_bounds = array<i64: 2>, scalar_prefetch = 0 : i64, scratch_operands = 0 : i64, tpu.core_type = #tpu.core_type<tc>, window_params = [{transform_indices = @transform_0, window_bounds = array<i64: 1, 256>}, {transform_indices = @transform_1, window_bounds = array<i64: 8, 256>}, {transform_indices = @transform_2, window_bounds = array<i64: 1, 256>}]} {
    %c0 = arith.constant 0 : index
    %c0_0 = arith.constant 0 : index
    %0 = vector.load %arg1[%c0, %c0_0] : memref<1x256xf32, #tpu.memory_space<vmem>>, vector<1x256xf32>
    %cst = arith.constant 1.000000e+00 : f32
    %1 = vector.broadcast %cst : f32 to vector<1x256xf32>
    %2 = arith.divf %1, %0 : vector<1x256xf32>
    %c3 = arith.constant 3 : index
    %c0_1 = arith.constant 0 : index
    %3 = vector.load %arg2[%c3, %c0_1] : memref<8x256xf32, #tpu.memory_space<vmem>>, vector<1x256xf32>
    %c7 = arith.constant 7 : index
    %c0_2 = arith.constant 0 : index
    %4 = vector.load %arg2[%c7, %c0_2] : memref<8x256xf32, #tpu.memory_space<vmem>>, vector<1x256xf32>
    %5 = arith.addf %3, %4 : vector<1x256xf32>
    %c2 = arith.constant 2 : index
    %c0_3 = arith.constant 0 : index
    %6 = vector.load %arg2[%c2, %c0_3] : memref<8x256xf32, #tpu.memory_space<vmem>>, vector<1x256xf32>
    %c6 = arith.constant 6 : index
    %c0_4 = arith.constant 0 : index
    %7 = vector.load %arg2[%c6, %c0_4] : memref<8x256xf32, #tpu.memory_space<vmem>>, vector<1x256xf32>
    %8 = arith.addf %6, %7 : vector<1x256xf32>
    %9 = arith.mulf %2, %5 : vector<1x256xf32>
    %10 = arith.addf %8, %9 : vector<1x256xf32>
    %c1 = arith.constant 1 : index
    %c0_5 = arith.constant 0 : index
    %11 = vector.load %arg2[%c1, %c0_5] : memref<8x256xf32, #tpu.memory_space<vmem>>, vector<1x256xf32>
    %c5 = arith.constant 5 : index
    %c0_6 = arith.constant 0 : index
    %12 = vector.load %arg2[%c5, %c0_6] : memref<8x256xf32, #tpu.memory_space<vmem>>, vector<1x256xf32>
    %13 = arith.addf %11, %12 : vector<1x256xf32>
    %14 = arith.mulf %2, %10 : vector<1x256xf32>
    %15 = arith.addf %13, %14 : vector<1x256xf32>
    %c0_7 = arith.constant 0 : index
    %c0_8 = arith.constant 0 : index
    %16 = vector.load %arg2[%c0_7, %c0_8] : memref<8x256xf32, #tpu.memory_space<vmem>>, vector<1x256xf32>
    %c4 = arith.constant 4 : index
    %c0_9 = arith.constant 0 : index
    %17 = vector.load %arg2[%c4, %c0_9] : memref<8x256xf32, #tpu.memory_space<vmem>>, vector<1x256xf32>
    %18 = arith.addf %16, %17 : vector<1x256xf32>
    %19 = arith.mulf %2, %15 : vector<1x256xf32>
    %20 = arith.addf %18, %19 : vector<1x256xf32>
    %21 = arith.mulf %20, %2 : vector<1x256xf32>
    %cst_10 = arith.constant 5.000000e-01 : f32
    %22 = vector.broadcast %cst_10 : f32 to vector<1x256xf32>
    %23 = arith.mulf %22, %21 : vector<1x256xf32>
    %c0_11 = arith.constant 0 : index
    %c0_12 = arith.constant 0 : index
    %24 = vector.load %arg3[%c0_11, %c0_12] : memref<1x256xf32, #tpu.memory_space<vmem>>, vector<1x256xf32>
    tpu.vector_store %arg3[%c0_11, %c0_12], %23 {strides = array<i32>} : memref<1x256xf32, #tpu.memory_space<vmem>>, vector<1x256xf32>,
    return
  }
  func.func @transform_0(%arg0: i32) -> (i32, i32) {
    %c0_i32 = arith.constant 0 : i32
    %c0_i32_0 = arith.constant 0 : i32
    return %c0_i32, %arg0 : i32, i32
  }
  func.func @transform_1(%arg0: i32) -> (i32, i32) {
    %c0_i32 = arith.constant 0 : i32
    %c0_i32_0 = arith.constant 0 : i32
    return %c0_i32, %arg0 : i32, i32
  }
  func.func @transform_2(%arg0: i32) -> (i32, i32) {
    %c0_i32 = arith.constant 0 : i32
    %c0_i32_0 = arith.constant 0 : i32
    return %c0_i32, %arg0 : i32, i32
  }
}

</mosaic_0001>

<llo_original>
// kernel: tpu_custom_call.1
$region0: #{tpu_custom_call.1}
  #allocation0 [shape = 'u32[]', space=smem, size = 0x4, offset = 0x4, fixed_abs, tag = 'smem constant byte address 0x4 - core index']
  #allocation1 [shape = 'u32[144,128]{1,0:T(1,128)}', space=vmem, size = 0x12000, scoped, tag = 'internal scratch']
  %s0 = inlined_call_operand.hbm [shape: f32[1,512], index: 0, kind: input, shape index: {}]
  %s1 = inlined_call_operand.hbm [shape: f32[8,512], index: 1, kind: input, shape index: {}]
  %s2 = inlined_call_operand.hbm [shape: f32[1,512], index: 2, kind: output, shape index: {}]
  %s3 = sld [smem:[#allocation0]]
  $region49: #{tpu_custom_call.1} parent=0
    _
  %s5 = ssub.s32 1, %s3
  %s6 = scalar_select 0, %s5, %s3
  $region1: #{tpu_custom_call.1} parent=0
    #allocation2 [shape = 'u8[2048]{0}', space=vmem, size = 0x800, scoped, tag = 'input window, operand 0']
    #allocation3 [shape = 's32[2]{0}', space=sflag, size = 0x8, scoped, tag = 'scoped memory for tpu_custom_call.1']
    #allocation4 [shape = 's32[2]{0}', space=sflag, size = 0x8, scoped, tag = 'scoped memory for tpu_custom_call.1']
    #allocation5 [shape = 'u8[16384]{0}', space=vmem, size = 0x4000, scoped, tag = 'input window, operand 1']
    #allocation6 [shape = 's32[2]{0}', space=sflag, size = 0x8, scoped, tag = 'scoped memory for tpu_custom_call.1']
    #allocation7 [shape = 'u8[2048]{0}', space=vmem, size = 0x800, scoped, tag = 'output window, operand 0']
    %7 = vsyncpa [#allocation3], 0
    %s8 = scalar_lea.sflag [#allocation3], 1
    %9 = vsyncpa %s8, 0
    %10 = vsyncpa [#allocation6], 0
    %s11 = scalar_lea.sflag [#allocation6], 1
    %12 = vsyncpa %s11, 0
    %13 = vsyncpa [#allocation4], 0
    %s14 = scalar_lea.sflag [#allocation4], 1
    %15 = vsyncpa %s14, 0
    loop: start=0, step=1, limit=4
    $region2: #{tpu_custom_call.1} parent=1 // loop_pre_header
      _
    $region3: #{tpu_custom_call.1} parent=1 // loop_header
      %s17 = sphi 0, %s21
      %p18 = scmp.ge.s32.totalorder %s17, 4
      %s27 = sphi 0, %s29
      %s30 = sphi 0, %s27
      %s31 = sphi 0, %s30
      %s47 = sphi 0, %s31
      %s53 = sphi 0, %s55
      %s56 = sphi 0, %s53
      %s57 = sphi 0, %s56
      %s73 = sphi 0, %s57
      %s79 = sphi 0, %s81
      %s82 = sphi 0, %s79
      %s83 = sphi 0, %s82
      %s99 = sphi 0, %s83
    $region4: #{tpu_custom_call.1} parent=1 // loop_header_branch
      %20 = sbr.rel (%p18) target = $region8
    $region5: #{tpu_custom_call.1} parent=1 // loop_body
      %s22 = ssub.s32 %s17, 1
      %s23 = ssub.s32 %s17, 2
      %s24 = sadd.s32 %s17, 1
      %s25 = ssub.s32 %s17, %s24
      %p26 = scmp.eq.s32.totalorder %s25, 0
      %s28 = sadd.s32 %s27, 1
      %s29 = scalar_select %p26, %s27, %s28
      %p32 = pneg %p26
      %p33 = scmp.eq.s32.totalorder %s17, 1
      %p34 = por %p32, %p33
      %p35 = scmp.ne.s32.totalorder %s27, %s30
      %p36 = scmp.eq.s32.totalorder %s17, 0
      %p37 = por %p35, %p36
      %p38 = scmp.ne.s32.totalorder %s27, %s30
      %p39 = scmp.eq.s32.totalorder %s22, 1
      %p40 = por %p38, %p39
      %p41 = scmp.ne.s32.totalorder %s30, %s31
      %p42 = scmp.eq.s32.totalorder %s22, 0
      %p43 = por %p41, %p42
      %p44 = scmp.ne.s32.totalorder %s30, %s31
      %p45 = scmp.eq.s32.totalorder %s23, 1
      %p46 = por %p44, %p45
      %p48 = scmp.ne.s32.totalorder %s31, %s47
      %p49 = scmp.eq.s32.totalorder %s23, 0
      %p50 = por %p48, %p49
      %s51 = ssub.s32 %s17, %s24
      %p52 = scmp.eq.s32.totalorder %s51, 0
      %s54 = sadd.s32 %s53, 1
      %s55 = scalar_select %p52, %s53, %s54
      %p58 = pneg %p52
      %p59 = scmp.eq.s32.totalorder %s17, 1
      %p60 = por %p58, %p59
      %p61 = scmp.ne.s32.totalorder %s53, %s56
      %p62 = scmp.eq.s32.totalorder %s17, 0
      %p63 = por %p61, %p62
      %p64 = scmp.ne.s32.totalorder %s53, %s56
      %p65 = scmp.eq.s32.totalorder %s22, 1
      %p66 = por %p64, %p65
      %p67 = scmp.ne.s32.totalorder %s56, %s57
      %p68 = scmp.eq.s32.totalorder %s22, 0
      %p69 = por %p67, %p68
      %p70 = scmp.ne.s32.totalorder %s56, %s57
      %p71 = scmp.eq.s32.totalorder %s23, 1
      %p72 = por %p70, %p71
      %p74 = scmp.ne.s32.totalorder %s57, %s73
      %p75 = scmp.eq.s32.totalorder %s23, 0
      %p76 = por %p74, %p75
      %s77 = ssub.s32 %s17, %s24
      %p78 = scmp.eq.s32.totalorder %s77, 0
      %s80 = sadd.s32 %s79, 1
      %s81 = scalar_select %p78, %s79, %s80
      %p84 = pneg %p78
      %p85 = scmp.eq.s32.totalorder %s17, 1
      %p86 = por %p84, %p85
      %p87 = scmp.ne.s32.totalorder %s79, %s82
      %p88 = scmp.eq.s32.totalorder %s17, 0
      %p89 = por %p87, %p88
      %p90 = scmp.ne.s32.totalorder %s79, %s82
      %p91 = scmp.eq.s32.totalorder %s22, 1
      %p92 = por %p90, %p91
      %p93 = scmp.ne.s32.totalorder %s82, %s83
      %p94 = scmp.eq.s32.totalorder %s22, 0
      %p95 = por %p93, %p94
      %p96 = scmp.ne.s32.totalorder %s82, %s83
      %p97 = scmp.eq.s32.totalorder %s23, 1
      %p98 = por %p96, %p97
      %p100 = scmp.ne.s32.totalorder %s83, %s99
      %p101 = scmp.eq.s32.totalorder %s23, 0
      %p102 = por %p100, %p101
      %p103 = scmp.le.s32.totalorder 1, %s17
      %p104 = scmp.lt.s32.totalorder %s17, 3
      %p105 = pnand %p103, %p104
      %p106 = pneg %p105
      // Predicated region
      $region9: #{tpu_custom_call.1} parent=5 // pred_check
        _
      $region10: #{tpu_custom_call.1} parent=5 // pred_check_branch
        %108 = sbr.rel (%p105) target = $region12
      $region11: #{tpu_custom_call.1} parent=5 // pred_region
        %s109 = ssub.s32 %s17, 1
      $region12: #{tpu_custom_call.1} parent=5 // pred_fallthru
        _
      %p110 = scmp.lt.s32.totalorder %s17, 2
      // Predicated region
      $region13: #{tpu_custom_call.1} parent=5 // pred_check
        %p111 = pneg %p110
      $region14: #{tpu_custom_call.1} parent=5 // pred_check_branch
        %113 = sbr.rel (%p111) target = $region16
      $region15: #{tpu_custom_call.1} parent=5 // pred_region
        // Predicated region
        $region17: #{tpu_custom_call.1} parent=15 // pred_check
          %p114 = pneg %p37
        $region18: #{tpu_custom_call.1} parent=15 // pred_check_branch
          %116 = sbr.rel (%p114) target = $region20
        $region19: #{tpu_custom_call.1} parent=15 // pred_region
          %s117 = sand.u32 %s27, 1
          %s118 = scalar_lea.sflag [#allocation3], %s117
          %s119 = sand.u32 %s27, 1
          %s120 = smul.addr %s119, 2
          %s121 = scalar_lea.vmem [#allocation2], %s120
          %s122 = smul.u32 2, %s17
          %s124 = ssub.s32 32, 32
          %125 = vsyncadd %s118, %s124
          %s126 = smul.addr %s122, 16
          %s127 = scalar_lea.hbm %s0, %s126
          %s129 = sshll.u32 %s121, 4
          %s130 = int_to_ptr.vmem [resolvable:$true] %s129
          %132 = dma.hbm_to_vmem [thread:$0]  %s127, 32, %s130, %s118
        $region20: #{tpu_custom_call.1} parent=15 // pred_fallthru
          _
        // Predicated region
        $region21: #{tpu_custom_call.1} parent=15 // pred_check
          %p133 = pneg %p63
        $region22: #{tpu_custom_call.1} parent=15 // pred_check_branch
          %135 = sbr.rel (%p133) target = $region24
        $region23: #{tpu_custom_call.1} parent=15 // pred_region
          %s136 = sand.u32 %s53, 1
          %s137 = scalar_lea.sflag [#allocation6], %s136
          %s138 = sand.u32 %s53, 1
          %s139 = smul.addr %s138, 16
          %s140 = scalar_lea.vmem [#allocation5], %s139
          %s141 = smul.u32 2, %s17
          %s143 = ssub.s32 256, 256
          %144 = vsyncadd %s137, %s143
          %s145 = smul.addr %s141, 128
          %s146 = scalar_lea.hbm %s1, %s145
          %s148 = sshll.u32 %s140, 4
          %s149 = int_to_ptr.vmem [resolvable:$true] %s148
          %151 = dma.hbm_to_vmem [thread:$0]  %s146, 256, %s149, %s137
        $region24: #{tpu_custom_call.1} parent=15 // pred_fallthru
          _
      $region16: #{tpu_custom_call.1} parent=5 // pred_fallthru
        _
      %p152 = scmp.le.s32.totalorder 1, %s17
      %p153 = scmp.lt.s32.totalorder %s17, 3
      %p154 = pnand %p152, %p153
      %p155 = pneg %p154
      // Predicated region
      $region25: #{tpu_custom_call.1} parent=5 // pred_check
        _
      $region26: #{tpu_custom_call.1} parent=5 // pred_check_branch
        %157 = sbr.rel (%p154) target = $region28
      $region27: #{tpu_custom_call.1} parent=5 // pred_region
        %s158 = ssub.s32 %s17, 1
        %s159 = sand.u32 %s30, 1
        %s160 = scalar_lea.sflag [#allocation3], %s159
        %s161 = sand.u32 %s30, 1
        %s162 = smul.addr %s161, 2
        %s163 = scalar_lea.vmem [#allocation2], %s162
        // Predicated region
        $region29: #{tpu_custom_call.1} parent=27 // pred_check
          %p164 = pneg %p43
        $region30: #{tpu_custom_call.1} parent=27 // pred_check_branch
          %166 = sbr.rel (%p164) target = $region32
        $region31: #{tpu_custom_call.1} parent=27 // pred_region
          %167 = dma.done %s160, 32
        $region32: #{tpu_custom_call.1} parent=27 // pred_fallthru
          _
        %s168 = sand.u32 %s56, 1
        %s169 = scalar_lea.sflag [#allocation6], %s168
        %s170 = sand.u32 %s56, 1
        %s171 = smul.addr %s170, 16
        %s172 = scalar_lea.vmem [#allocation5], %s171
        // Predicated region
        $region33: #{tpu_custom_call.1} parent=27 // pred_check
          %p173 = pneg %p69
        $region34: #{tpu_custom_call.1} parent=27 // pred_check_branch
          %175 = sbr.rel (%p173) target = $region36
        $region35: #{tpu_custom_call.1} parent=27 // pred_region
          %176 = dma.done %s169, 256
        $region36: #{tpu_custom_call.1} parent=27 // pred_fallthru
          _
        %s177 = sand.u32 %s30, 1
        %s178 = scalar_lea.sflag [#allocation3], %s177
        %s179 = sand.u32 %s30, 1
        %s180 = smul.addr %s179, 2
        %s181 = scalar_lea.vmem [#allocation2], %s180
        %p182 = pneg %p43
        %p183 = pneg %p40
        %s184 = sand.u32 %s56, 1
        %s185 = scalar_lea.sflag [#allocation6], %s184
        %s186 = sand.u32 %s56, 1
        %s187 = smul.addr %s186, 16
        %s188 = scalar_lea.vmem [#allocation5], %s187
        %p189 = pneg %p69
        %p190 = pneg %p66
        %p191 = pneg %p95
        %p192 = pneg %p92
        %s193 = sand.u32 %s82, 1
        %s194 = scalar_lea.sflag [#allocation4], %s193
        %s195 = sand.u32 %s82, 1
        %s196 = smul.addr %s195, 2
        %s197 = scalar_lea.vmem [#allocation7], %s196
        %s198 = smul.u32 2, %s22
        %s199 = smul.u32 2, %s22
        %s200 = smul.u32 2, %s22
        %v201 = vld [vmem:[%s163] sm:$0x3]
        %v202 = vrcp.pop %v201
        %v203 = vmul.f32 1.0, %v202
        %s204 = scalar_lea.vmem %s172, 3 [#allocation5]
        %v205 = vld [vmem:[%s204] ss:$8 sm:$0x3]
        %s206 = scalar_lea.vmem %s172, 7 [#allocation5]
        %v207 = vld [vmem:[%s206] ss:$8 sm:$0x3]
        %v208 = vadd.f32 %v205, %v207
        %s209 = scalar_lea.vmem %s172, 2 [#allocation5]
        %v210 = vld [vmem:[%s209] ss:$8 sm:$0x3]
        %s211 = scalar_lea.vmem %s172, 6 [#allocation5]
        %v212 = vld [vmem:[%s211] ss:$8 sm:$0x3]
        %v213 = vadd.f32 %v210, %v212
        %v214 = vmul.f32 %v203, %v208
        %v215 = vadd.f32 %v213, %v214
        %s216 = scalar_lea.vmem %s172, 1 [#allocation5]
        %v217 = vld [vmem:[%s216] ss:$8 sm:$0x3]
        %s218 = scalar_lea.vmem %s172, 5 [#allocation5]
        %v219 = vld [vmem:[%s218] ss:$8 sm:$0x3]
        %v220 = vadd.f32 %v217, %v219
        %v221 = vmul.f32 %v203, %v215
        %v222 = vadd.f32 %v220, %v221
        %v223 = vld [vmem:[%s172] ss:$8 sm:$0x3]
        %s224 = scalar_lea.vmem %s172, 4 [#allocation5]
        %v225 = vld [vmem:[%s224] ss:$8 sm:$0x3]
        %v226 = vadd.f32 %v223, %v225
        %v227 = vmul.f32 %v203, %v222
        %v228 = vadd.f32 %v226, %v227
        %v229 = vmul.f32 %v228, %v203
        %v230 = vmul.f32 %v229, 0.5
        %v231 = vlaneseq
        %vm232 = vcmp.ge.s32.totalorder %v231, 0
        %vm233 = vcmp.lt.s32.totalorder %v231, 256
        %vm234 = vmand %vm232, %vm233
        %235 = vst.msk [vmem:[%s197] sm:$0x3] %vm234, %v230
        %s236 = sand.u32 %s82, 1
        %s237 = scalar_lea.sflag [#allocation4], %s236
        %s238 = sand.u32 %s82, 1
        %s239 = smul.addr %s238, 2
        %s240 = scalar_lea.vmem [#allocation7], %s239
        // Predicated region
        $region37: #{tpu_custom_call.1} parent=27 // pred_check
          %p241 = pneg %p92
        $region38: #{tpu_custom_call.1} parent=27 // pred_check_branch
          %243 = sbr.rel (%p241) target = $region40
        $region39: #{tpu_custom_call.1} parent=27 // pred_region
          %s244 = smul.u32 2, %s22
          %s246 = ssub.s32 32, 32
          %247 = vsyncadd %s237, %s246
          %s248 = smul.addr %s244, 16
          %s249 = scalar_lea.hbm %s2, %s248
          %s251 = sshll.u32 %s240, 4
          %s252 = int_to_ptr.vmem [resolvable:$true] %s251
          %254 = dma.vmem_to_hbm [thread:$0]  %s252, 32, %s249, %s237
        $region40: #{tpu_custom_call.1} parent=27 // pred_fallthru
          _
      $region28: #{tpu_custom_call.1} parent=5 // pred_fallthru
        _
      %p255 = scmp.le.s32.totalorder 2, %s17
      // Predicated region
      $region41: #{tpu_custom_call.1} parent=5 // pred_check
        %p256 = pneg %p255
      $region42: #{tpu_custom_call.1} parent=5 // pred_check_branch
        %258 = sbr.rel (%p256) target = $region44
      $region43: #{tpu_custom_call.1} parent=5 // pred_region
        %s259 = ssub.s32 %s17, 2
        // Predicated region
        $region45: #{tpu_custom_call.1} parent=43 // pred_check
          %p260 = pneg %p98
        $region46: #{tpu_custom_call.1} parent=43 // pred_check_branch
          %262 = sbr.rel (%p260) target = $region48
        $region47: #{tpu_custom_call.1} parent=43 // pred_region
          %s263 = sand.u32 %s83, 1
          %s264 = scalar_lea.sflag [#allocation4], %s263
          %s265 = sand.u32 %s83, 1
          %s266 = smul.addr %s265, 2
          %s267 = scalar_lea.vmem [#allocation7], %s266
          %268 = dma.done %s264, 32
        $region48: #{tpu_custom_call.1} parent=43 // pred_fallthru
          _
      $region44: #{tpu_custom_call.1} parent=5 // pred_fallthru
        _
    $region6: #{tpu_custom_call.1} parent=1 // loop_footer
      %s21 = sadd.s32 1, %s17
    $region7: #{tpu_custom_call.1} parent=1 // loop_footer_branch
      %16 = sbr.rel target = $region3
    $region8: #{tpu_custom_call.1} parent=1 // loop_exit
      _
    %269 = vsyncpa [#allocation3], 1
    %s270 = scalar_lea.sflag [#allocation3], 1
    %271 = vsyncpa %s270, 1
    %272 = vsyncpa [#allocation6], 1
    %s273 = scalar_lea.sflag [#allocation6], 1
    %274 = vsyncpa %s273, 1
    %275 = vsyncpa [#allocation4], 1
    %s276 = scalar_lea.sflag [#allocation4], 1
    %277 = vsyncpa %s276, 1

</llo_original>
